<compile_context>
chip_gen: v6e
topology: v6e:2x2x1
jax: 0.10.0
libtpu: 0.0.40
codegen_flags: <defaults>
</compile_context>

<pallas_src>
import functools

import jax
import jax.numpy as jnp
from jax.experimental import pallas as pl
from jax.experimental.pallas import tpu as pltpu


def net_kernel(x_ref, a_ref, c_ref, d_ref, e_ref, o_ref):
    # x_ref: (16, W) f32 VMEM tile   rows 0..7 = x0 slab, rows 8..15 = x1 slab
    # a/c/d/e: folded weights in SMEM (20,), (10,), (10,), (1,)
    # o_ref: (8, W) f32 output tile (lane- and sublane-dense)
    x0 = x_ref[0:8, :]                 # (8, W) feature 0, dense vregs
    x1 = x_ref[8:16, :]                # (8, W) feature 1, dense vregs

    acc = jnp.zeros_like(x0)
    for j in range(10):                # static unroll over the 10 hidden units
        # z = 0.5 * (W1 @ x + b1)_j, built from SMEM scalars (scalar * vector FMAs)
        z = a_ref[2 * j] * x0 + a_ref[2 * j + 1] * x1 + c_ref[j]
        acc = acc + d_ref[j] * jnp.tanh(z)      # d = 0.25 * w2 ; tanh rides the EUP slot

    # o = sigmoid(w2 . sigmoid(W1 x + b1) + b2) == 0.5 * tanh(acc + e) + 0.5
    o_ref[...] = 0.5 * jnp.tanh(acc + e_ref[0]) + 0.5


@functools.partial(jax.jit, static_argnames=("tb",))
def net_forward(x, w1, b1, w2, b2, *, tb=65536):
    """Forward pass of Net.

    x : (B, 2) float32
    w1: (10, 2) fc1.weight     b1: (10,) fc1.bias
    w2: (10,)   fc2.weight     b2: (1,)  fc2.bias
    returns (B, 1) float32
    """
    B = x.shape[0]

    # ---- tile geometry: batch elements per grid step = 8 * W  (W = lane width) ----
    L = pl.cdiv(B, 8)                                     # lanes needed for the batch
    W = 128 * max(1, min(tb // 1024, pl.cdiv(L, 128)))    # multiple of 128
    g = pl.cdiv(L, W)
    if g == 1 and W > 128:                                # keep >=2 steps (v7x megacore)
        W = 128 * pl.cdiv(pl.cdiv(L, 2), 128)
        g = pl.cdiv(L, W)
    Lp = W * g                                            # padded lane count -> no ragged blocks
    Bp = 8 * Lp

    # ---- fold sigmoid(z) = 0.5*tanh(0.5 z) + 0.5 constants into the 31 weights ----
    w1f = jnp.asarray(w1, jnp.float32)                    # (10, 2)
    w2f = jnp.asarray(w2, jnp.float32).reshape(10)
    a = (0.5 * w1f).reshape(20)                           # a[2j]=0.5*w1[j,0], a[2j+1]=0.5*w1[j,1]
    c = 0.5 * jnp.asarray(b1, jnp.float32).reshape(10)
    d = 0.25 * w2f
    e = 0.5 * jnp.asarray(b2, jnp.float32).reshape(1) + 0.25 * jnp.sum(w2f)

    # ---- host layout pass: (B,2) -> feature-major (16, Lp) slab, batch zero-padded ----
    # batch element b lives at (row = 8*f + b//Lp, col = b % Lp) for feature f.
    xt = jnp.zeros((2, Bp), jnp.float32).at[:, :B].set(x.astype(jnp.float32).T)
    x16 = xt.reshape(16, Lp)

    out = pl.pallas_call(
        net_kernel,
        out_shape=jax.ShapeDtypeStruct((8, Lp), jnp.float32),
        grid=(g,),
        in_specs=[
            pl.BlockSpec((16, W), lambda i: (0, i)),                    # x tile (batch-tiled)
            pl.BlockSpec(memory_space=pltpu.MemorySpace.SMEM),          # a (20,)
            pl.BlockSpec(memory_space=pltpu.MemorySpace.SMEM),          # c (10,)
            pl.BlockSpec(memory_space=pltpu.MemorySpace.SMEM),          # d (10,)
            pl.BlockSpec(memory_space=pltpu.MemorySpace.SMEM),          # e (1,)
        ],
        out_specs=pl.BlockSpec((8, W), lambda i: (0, i)),
        compiler_params=pltpu.CompilerParams(
            dimension_semantics=("parallel",),                          # shard tiles across TCs
        ),
    )(x16, a, c, d, e)

    # (8, Lp) -> flat batch order -> (B, 1)   (contiguous reshape + cheap slice)
    return out.reshape(Bp)[:B].reshape(B, 1)


def init_params(key):
    # Deterministic init mimicking nn.Linear's U(-1/sqrt(fan_in), 1/sqrt(fan_in)).
    k1, k2, k3, k4 = jax.random.split(key, 4)
    lim1 = 1.0 / jnp.sqrt(2.0)
    lim2 = 1.0 / jnp.sqrt(10.0)
    w1 = jax.random.uniform(k1, (10, 2), jnp.float32, -lim1, lim1)   # fc1.weight
    b1 = jax.random.uniform(k2, (10,), jnp.float32, -lim1, lim1)     # fc1.bias
    w2 = jax.random.uniform(k3, (10,), jnp.float32, -lim2, lim2)     # fc2.weight (flattened)
    b2 = jax.random.uniform(k4, (1,), jnp.float32, -lim2, lim2)      # fc2.bias
    return w1, b1, w2, b2


def reference_forward(x, w1, b1, w2, b2):
    # Pure-JAX reference with identical math: sigmoid(W1 x + b1), sigmoid(w2 . h + b2)
    h = jax.nn.sigmoid(x @ w1.T + b1)                   # (B, 10)
    return jax.nn.sigmoid(h @ w2.reshape(10, 1) + b2)   # (B, 1)


if __name__ == "__main__":
    key = jax.random.PRNGKey(0)
    kx, kp = jax.random.split(key)
    B = 8                                   # small demo batch (pads to one (8,128) tile)
    x = jax.random.normal(kx, (B, 2), jnp.float32)
    w1, b1, w2, b2 = init_params(kp)

    out = net_forward(x, w1, b1, w2, b2)
    out = jax.block_until_ready(out)

    ref = reference_forward(x, w1, b1, w2, b2)
    assert out.shape == (B, 1)
    assert jnp.allclose(out, ref, atol=1e-5, rtol=1e-5)
    print("KERNEL_OK")
</pallas_src>

<mosaic_0001>
module attributes {stable_mosaic.version = 11 : i64} {
  func.func @net_kernel(%arg0: i32, %arg1: memref<16x128xf32, #tpu.memory_space<vmem>>, %arg2: memref<20xf32, #tpu.memory_space<smem>>, %arg3: memref<10xf32, #tpu.memory_space<smem>>, %arg4: memref<10xf32, #tpu.memory_space<smem>>, %arg5: memref<1xf32, #tpu.memory_space<smem>>, %arg6: memref<8x128xf32, #tpu.memory_space<vmem>>) attributes {dimension_semantics = [#tpu.dimension_semantics<parallel>], iteration_bounds = array<i64: 1>, scalar_prefetch = 0 : i64, scratch_operands = 0 : i64, tpu.core_type = #tpu.core_type<tc>, window_params = [{transform_indices = @transform_0, window_bounds = array<i64: 16, 128>}, {transform_indices = @transform_1, window_bounds = array<i64: 20>}, {transform_indices = @transform_2, window_bounds = array<i64: 10>}, {transform_indices = @transform_3, window_bounds = array<i64: 10>}, {transform_indices = @transform_4, window_bounds = array<i64: 1>}, {transform_indices = @transform_5, window_bounds = array<i64: 8, 128>}]} {
    %c0 = arith.constant 0 : index
    %c0_0 = arith.constant 0 : index
    %0 = vector.load %arg1[%c0, %c0_0] : memref<16x128xf32, #tpu.memory_space<vmem>>, vector<8x128xf32>
    %c8 = arith.constant 8 : index
    %c0_1 = arith.constant 0 : index
    %1 = vector.load %arg1[%c8, %c0_1] : memref<16x128xf32, #tpu.memory_space<vmem>>, vector<8x128xf32>
    %cst = arith.constant 0.000000e+00 : f32
    %2 = vector.broadcast %cst : f32 to vector<8x128xf32>
    %c0_2 = arith.constant 0 : index
    %3 = memref.load %arg2[%c0_2] : memref<20xf32, #tpu.memory_space<smem>>
    %4 = vector.broadcast %3 : f32 to vector<8x128xf32>
    %5 = arith.mulf %4, %0 : vector<8x128xf32>
    %c1 = arith.constant 1 : index
    %6 = memref.load %arg2[%c1] : memref<20xf32, #tpu.memory_space<smem>>
    %7 = vector.broadcast %6 : f32 to vector<8x128xf32>
    %8 = arith.mulf %7, %1 : vector<8x128xf32>
    %9 = arith.addf %5, %8 : vector<8x128xf32>
    %c0_3 = arith.constant 0 : index
    %10 = memref.load %arg3[%c0_3] : memref<10xf32, #tpu.memory_space<smem>>
    %11 = vector.broadcast %10 : f32 to vector<8x128xf32>
    %12 = arith.addf %9, %11 : vector<8x128xf32>
    %c0_4 = arith.constant 0 : index
    %13 = memref.load %arg4[%c0_4] : memref<10xf32, #tpu.memory_space<smem>>
    %14 = math.tanh %12 : vector<8x128xf32>
    %15 = vector.broadcast %13 : f32 to vector<8x128xf32>
    %16 = arith.mulf %15, %14 : vector<8x128xf32>
    %17 = arith.addf %2, %16 : vector<8x128xf32>
    %c2 = arith.constant 2 : index
    %18 = memref.load %arg2[%c2] : memref<20xf32, #tpu.memory_space<smem>>
    %19 = vector.broadcast %18 : f32 to vector<8x128xf32>
    %20 = arith.mulf %19, %0 : vector<8x128xf32>
    %c3 = arith.constant 3 : index
    %21 = memref.load %arg2[%c3] : memref<20xf32, #tpu.memory_space<smem>>
    %22 = vector.broadcast %21 : f32 to vector<8x128xf32>
    %23 = arith.mulf %22, %1 : vector<8x128xf32>
    %24 = arith.addf %20, %23 : vector<8x128xf32>
    %c1_5 = arith.constant 1 : index
    %25 = memref.load %arg3[%c1_5] : memref<10xf32, #tpu.memory_space<smem>>
    %26 = vector.broadcast %25 : f32 to vector<8x128xf32>
    %27 = arith.addf %24, %26 : vector<8x128xf32>
    %c1_6 = arith.constant 1 : index
    %28 = memref.load %arg4[%c1_6] : memref<10xf32, #tpu.memory_space<smem>>
    %29 = math.tanh %27 : vector<8x128xf32>
    %30 = vector.broadcast %28 : f32 to vector<8x128xf32>
    %31 = arith.mulf %30, %29 : vector<8x128xf32>
    %32 = arith.addf %17, %31 : vector<8x128xf32>
    %c4 = arith.constant 4 : index
    %33 = memref.load %arg2[%c4] : memref<20xf32, #tpu.memory_space<smem>>
    %34 = vector.broadcast %33 : f32 to vector<8x128xf32>
    %35 = arith.mulf %34, %0 : vector<8x128xf32>
    %c5 = arith.constant 5 : index
    %36 = memref.load %arg2[%c5] : memref<20xf32, #tpu.memory_space<smem>>
    %37 = vector.broadcast %36 : f32 to vector<8x128xf32>
    %38 = arith.mulf %37, %1 : vector<8x128xf32>
    %39 = arith.addf %35, %38 : vector<8x128xf32>
    %c2_7 = arith.constant 2 : index
    %40 = memref.load %arg3[%c2_7] : memref<10xf32, #tpu.memory_space<smem>>
    %41 = vector.broadcast %40 : f32 to vector<8x128xf32>
    %42 = arith.addf %39, %41 : vector<8x128xf32>
    %c2_8 = arith.constant 2 : index
    %43 = memref.load %arg4[%c2_8] : memref<10xf32, #tpu.memory_space<smem>>
    %44 = math.tanh %42 : vector<8x128xf32>
    %45 = vector.broadcast %43 : f32 to vector<8x128xf32>
    %46 = arith.mulf %45, %44 : vector<8x128xf32>
    %47 = arith.addf %32, %46 : vector<8x128xf32>
    %c6 = arith.constant 6 : index
    %48 = memref.load %arg2[%c6] : memref<20xf32, #tpu.memory_space<smem>>
    %49 = vector.broadcast %48 : f32 to vector<8x128xf32>
    %50 = arith.mulf %49, %0 : vector<8x128xf32>
    %c7 = arith.constant 7 : index
    %51 = memref.load %arg2[%c7] : memref<20xf32, #tpu.memory_space<smem>>
    %52 = vector.broadcast %51 : f32 to vector<8x128xf32>
    %53 = arith.mulf %52, %1 : vector<8x128xf32>
    %54 = arith.addf %50, %53 : vector<8x128xf32>
    %c3_9 = arith.constant 3 : index
    %55 = memref.load %arg3[%c3_9] : memref<10xf32, #tpu.memory_space<smem>>
    %56 = vector.broadcast %55 : f32 to vector<8x128xf32>
    %57 = arith.addf %54, %56 : vector<8x128xf32>
    %c3_10 = arith.constant 3 : index
    %58 = memref.load %arg4[%c3_10] : memref<10xf32, #tpu.memory_space<smem>>
    %59 = math.tanh %57 : vector<8x128xf32>
    %60 = vector.broadcast %58 : f32 to vector<8x128xf32>
    %61 = arith.mulf %60, %59 : vector<8x128xf32>
    %62 = arith.addf %47, %61 : vector<8x128xf32>
    %c8_11 = arith.constant 8 : index
    %63 = memref.load %arg2[%c8_11] : memref<20xf32, #tpu.memory_space<smem>>
    %64 = vector.broadcast %63 : f32 to vector<8x128xf32>
    %65 = arith.mulf %64, %0 : vector<8x128xf32>
    %c9 = arith.constant 9 : index
    %66 = memref.load %arg2[%c9] : memref<20xf32, #tpu.memory_space<smem>>
    %67 = vector.broadcast %66 : f32 to vector<8x128xf32>
    %68 = arith.mulf %67, %1 : vector<8x128xf32>
    %69 = arith.addf %65, %68 : vector<8x128xf32>
    %c4_12 = arith.constant 4 : index
    %70 = memref.load %arg3[%c4_12] : memref<10xf32, #tpu.memory_space<smem>>
    %71 = vector.broadcast %70 : f32 to vector<8x128xf32>
    %72 = arith.addf %69, %71 : vector<8x128xf32>
    %c4_13 = arith.constant 4 : index
    %73 = memref.load %arg4[%c4_13] : memref<10xf32, #tpu.memory_space<smem>>
    %74 = math.tanh %72 : vector<8x128xf32>
    %75 = vector.broadcast %73 : f32 to vector<8x128xf32>
    %76 = arith.mulf %75, %74 : vector<8x128xf32>
    %77 = arith.addf %62, %76 : vector<8x128xf32>
    %c10 = arith.constant 10 : index
    %78 = memref.load %arg2[%c10] : memref<20xf32, #tpu.memory_space<smem>>
    %79 = vector.broadcast %78 : f32 to vector<8x128xf32>
    %80 = arith.mulf %79, %0 : vector<8x128xf32>
    %c11 = arith.constant 11 : index
    %81 = memref.load %arg2[%c11] : memref<20xf32, #tpu.memory_space<smem>>
    %82 = vector.broadcast %81 : f32 to vector<8x128xf32>
    %83 = arith.mulf %82, %1 : vector<8x128xf32>
    %84 = arith.addf %80, %83 : vector<8x128xf32>
    %c5_14 = arith.constant 5 : index
    %85 = memref.load %arg3[%c5_14] : memref<10xf32, #tpu.memory_space<smem>>
    %86 = vector.broadcast %85 : f32 to vector<8x128xf32>
    %87 = arith.addf %84, %86 : vector<8x128xf32>
    %c5_15 = arith.constant 5 : index
    %88 = memref.load %arg4[%c5_15] : memref<10xf32, #tpu.memory_space<smem>>
    %89 = math.tanh %87 : vector<8x128xf32>
    %90 = vector.broadcast %88 : f32 to vector<8x128xf32>
    %91 = arith.mulf %90, %89 : vector<8x128xf32>
    %92 = arith.addf %77, %91 : vector<8x128xf32>
    %c12 = arith.constant 12 : index
    %93 = memref.load %arg2[%c12] : memref<20xf32, #tpu.memory_space<smem>>
    %94 = vector.broadcast %93 : f32 to vector<8x128xf32>
    %95 = arith.mulf %94, %0 : vector<8x128xf32>
    %c13 = arith.constant 13 : index
    %96 = memref.load %arg2[%c13] : memref<20xf32, #tpu.memory_space<smem>>
    %97 = vector.broadcast %96 : f32 to vector<8x128xf32>
    %98 = arith.mulf %97, %1 : vector<8x128xf32>
    %99 = arith.addf %95, %98 : vector<8x128xf32>
    %c6_16 = arith.constant 6 : index
    %100 = memref.load %arg3[%c6_16] : memref<10xf32, #tpu.memory_space<smem>>
    %101 = vector.broadcast %100 : f32 to vector<8x128xf32>
    %102 = arith.addf %99, %101 : vector<8x128xf32>
    %c6_17 = arith.constant 6 : index
    %103 = memref.load %arg4[%c6_17] : memref<10xf32, #tpu.memory_space<smem>>
    %104 = math.tanh %102 : vector<8x128xf32>
    %105 = vector.broadcast %103 : f32 to vector<8x128xf32>
    %106 = arith.mulf %105, %104 : vector<8x128xf32>
    %107 = arith.addf %92, %106 : vector<8x128xf32>
    %c14 = arith.constant 14 : index
    %108 = memref.load %arg2[%c14] : memref<20xf32, #tpu.memory_space<smem>>
    %109 = vector.broadcast %108 : f32 to vector<8x128xf32>
    %110 = arith.mulf %109, %0 : vector<8x128xf32>
    %c15 = arith.constant 15 : index
    %111 = memref.load %arg2[%c15] : memref<20xf32, #tpu.memory_space<smem>>
    %112 = vector.broadcast %111 : f32 to vector<8x128xf32>
    %113 = arith.mulf %112, %1 : vector<8x128xf32>
    %114 = arith.addf %110, %113 : vector<8x128xf32>
    %c7_18 = arith.constant 7 : index
    %115 = memref.load %arg3[%c7_18] : memref<10xf32, #tpu.memory_space<smem>>
    %116 = vector.broadcast %115 : f32 to vector<8x128xf32>
    %117 = arith.addf %114, %116 : vector<8x128xf32>
    %c7_19 = arith.constant 7 : index
    %118 = memref.load %arg4[%c7_19] : memref<10xf32, #tpu.memory_space<smem>>
    %119 = math.tanh %117 : vector<8x128xf32>
    %120 = vector.broadcast %118 : f32 to vector<8x128xf32>
    %121 = arith.mulf %120, %119 : vector<8x128xf32>
    %122 = arith.addf %107, %121 : vector<8x128xf32>
    %c16 = arith.constant 16 : index
    %123 = memref.load %arg2[%c16] : memref<20xf32, #tpu.memory_space<smem>>
    %124 = vector.broadcast %123 : f32 to vector<8x128xf32>
    %125 = arith.mulf %124, %0 : vector<8x128xf32>
    %c17 = arith.constant 17 : index
    %126 = memref.load %arg2[%c17] : memref<20xf32, #tpu.memory_space<smem>>
    %127 = vector.broadcast %126 : f32 to vector<8x128xf32>
    %128 = arith.mulf %127, %1 : vector<8x128xf32>
    %129 = arith.addf %125, %128 : vector<8x128xf32>
    %c8_20 = arith.constant 8 : index
    %130 = memref.load %arg3[%c8_20] : memref<10xf32, #tpu.memory_space<smem>>
    %131 = vector.broadcast %130 : f32 to vector<8x128xf32>
    %132 = arith.addf %129, %131 : vector<8x128xf32>
    %c8_21 = arith.constant 8 : index
    %133 = memref.load %arg4[%c8_21] : memref<10xf32, #tpu.memory_space<smem>>
    %134 = math.tanh %132 : vector<8x128xf32>
    %135 = vector.broadcast %133 : f32 to vector<8x128xf32>
    %136 = arith.mulf %135, %134 : vector<8x128xf32>
    %137 = arith.addf %122, %136 : vector<8x128xf32>
    %c18 = arith.constant 18 : index
    %138 = memref.load %arg2[%c18] : memref<20xf32, #tpu.memory_space<smem>>
    %139 = vector.broadcast %138 : f32 to vector<8x128xf32>
    %140 = arith.mulf %139, %0 : vector<8x128xf32>
    %c19 = arith.constant 19 : index
    %141 = memref.load %arg2[%c19] : memref<20xf32, #tpu.memory_space<smem>>
    %142 = vector.broadcast %141 : f32 to vector<8x128xf32>
    %143 = arith.mulf %142, %1 : vector<8x128xf32>
    %144 = arith.addf %140, %143 : vector<8x128xf32>
    %c9_22 = arith.constant 9 : index
    %145 = memref.load %arg3[%c9_22] : memref<10xf32, #tpu.memory_space<smem>>
    %146 = vector.broadcast %145 : f32 to vector<8x128xf32>
    %147 = arith.addf %144, %146 : vector<8x128xf32>
    %c9_23 = arith.constant 9 : index
    %148 = memref.load %arg4[%c9_23] : memref<10xf32, #tpu.memory_space<smem>>
    %149 = math.tanh %147 : vector<8x128xf32>
    %150 = vector.broadcast %148 : f32 to vector<8x128xf32>
    %151 = arith.mulf %150, %149 : vector<8x128xf32>
    %152 = arith.addf %137, %151 : vector<8x128xf32>
    %c0_24 = arith.constant 0 : index
    %153 = memref.load %arg5[%c0_24] : memref<1xf32, #tpu.memory_space<smem>>
    %154 = vector.broadcast %153 : f32 to vector<8x128xf32>
    %155 = arith.addf %152, %154 : vector<8x128xf32>
    %156 = math.tanh %155 : vector<8x128xf32>
    %cst_25 = arith.constant 5.000000e-01 : f32
    %157 = vector.broadcast %cst_25 : f32 to vector<8x128xf32>
    %158 = arith.mulf %157, %156 : vector<8x128xf32>
    %cst_26 = arith.constant 5.000000e-01 : f32
    %159 = vector.broadcast %cst_26 : f32 to vector<8x128xf32>
    %160 = arith.addf %158, %159 : vector<8x128xf32>
    %c0_27 = arith.constant 0 : index
    %c0_28 = arith.constant 0 : index
    %161 = vector.load %arg6[%c0_27, %c0_28] : memref<8x128xf32, #tpu.memory_space<vmem>>, vector<8x128xf32>
    tpu.vector_store %arg6[%c0_27, %c0_28], %160 {strides = array<i32>} : memref<8x128xf32, #tpu.memory_space<vmem>>, vector<8x128xf32>,
    return
  }
  func.func @transform_0(%arg0: i32) -> (i32, i32) {
    %c0_i32 = arith.constant 0 : i32
    %c0_i32_0 = arith.constant 0 : i32
    return %c0_i32, %arg0 : i32, i32
  }
  func.func @transform_1(%arg0: i32) -> i32 {
    %c0_i32 = arith.constant 0 : i32
    %c0_i32_0 = arith.constant 0 : i32
    return %c0_i32 : i32
  }
  func.func @transform_2(%arg0: i32) -> i32 {
    %c0_i32 = arith.constant 0 : i32
    %c0_i32_0 = arith.constant 0 : i32
    return %c0_i32 : i32
  }
  func.func @transform_3(%arg0: i32) -> i32 {
    %c0_i32 = arith.constant 0 : i32
    %c0_i32_0 = arith.constant 0 : i32
    return %c0_i32 : i32
  }
  func.func @transform_4(%arg0: i32) -> i32 {
    %c0_i32 = arith.constant 0 : i32
    %c0_i32_0 = arith.constant 0 : i32
    return %c0_i32 : i32
  }
  func.func @transform_5(%arg0: i32) -> (i32, i32) {
    %c0_i32 = arith.constant 0 : i32
    %c0_i32_0 = arith.constant 0 : i32
    return %c0_i32, %arg0 : i32, i32
  }
}

</mosaic_0001>

<llo_original>
// kernel: net_forward.1
$region0: #{net_forward.1}
  #allocation0 [shape = 'u32[]', space=smem, size = 0x4, offset = 0x4, fixed_abs, tag = 'smem constant byte address 0x4 - core index']
  #allocation1 [shape = 'u32[144,128]{1,0:T(1,128)}', space=vmem, size = 0x12000, scoped, tag = 'internal scratch']
  #allocation2 [shape = 'f32[1]{0:T(128)S(6)}', space=smem, size = 0x200, scoped, tag = 'scoped memory for net_forward.1']
  %s0 = inlined_call_operand.vmem [shape: f32[16,128], index: 0, kind: input, shape index: {}]
  %s1 = inlined_call_operand.vmem [shape: f32[20], index: 1, kind: input, shape index: {}]
  %s2 = inlined_call_operand.vmem [shape: f32[10], index: 2, kind: input, shape index: {}]
  %s3 = inlined_call_operand.vmem [shape: f32[10], index: 3, kind: input, shape index: {}]
  %s4 = inlined_call_operand.<no memory space> [shape: f32[1], index: 4, kind: input, shape index: {}]
  %s5 = inlined_call_operand.vmem [shape: f32[8,128], index: 5, kind: output, shape index: {}]
  %s6 = sld [smem:[#allocation0]]
  $region42: #{net_forward.1} parent=0
    _
  %s8 = ssub.s32 1, %s6
  %s9 = scalar_select 0, %s8, %s6
  %10 = sst [smem:[#allocation2]] %s4
  $region1: #{net_forward.1} parent=0
    #allocation3 [shape = 'u8[512]{0}', space=smem, size = 0x200, scoped, tag = 'input window, operand 1, single buffered']
    #allocation4 [shape = 's32[1]{0}', space=sflag, size = 0x4, scoped, tag = 'scoped memory for net_forward.1']
    #allocation5 [shape = 'u8[512]{0}', space=smem, size = 0x200, scoped, tag = 'input window, operand 2, single buffered']
    #allocation6 [shape = 's32[1]{0}', space=sflag, size = 0x4, scoped, tag = 'scoped memory for net_forward.1']
    #allocation7 [shape = 'u8[512]{0}', space=smem, size = 0x200, scoped, tag = 'input window, operand 3, single buffered']
    %11 = vsyncpa [#allocation4], 0
    %12 = vsyncpa [#allocation6], 0
    // Predicated region
    $region2: #{net_forward.1} parent=1 // pred_check
      _
    $region3: #{net_forward.1} parent=1 // pred_check_branch
      %14 = sbr.rel (0) target = $region5
    $region4: #{net_forward.1} parent=1 // pred_region
      _
    $region5: #{net_forward.1} parent=1 // pred_fallthru
      _
    // Predicated region
    $region6: #{net_forward.1} parent=1 // pred_check
      _
    $region7: #{net_forward.1} parent=1 // pred_check_branch
      %16 = sbr.rel (0) target = $region9
    $region8: #{net_forward.1} parent=1 // pred_region
      %s18 = ssub.s32 16, 16
      %19 = vsyncadd [#allocation4], %s18
      %s21 = sshll.u32 %s1, 4
      %s22 = int_to_ptr.vmem [resolvable:$true] %s21
      %24 = dma.vmem_to_smem %s22, 16, [#allocation3], [#allocation4]
    $region9: #{net_forward.1} parent=1 // pred_fallthru
      _
    // Predicated region
    $region10: #{net_forward.1} parent=1 // pred_check
      _
    $region11: #{net_forward.1} parent=1 // pred_check_branch
      %26 = sbr.rel (0) target = $region13
    $region12: #{net_forward.1} parent=1 // pred_region
      %s28 = ssub.s32 16, 16
      %29 = vsyncadd [#allocation6], %s28
      %s31 = sshll.u32 %s2, 4
      %s32 = int_to_ptr.vmem [resolvable:$true] %s31
      %34 = dma.vmem_to_smem %s32, 16, [#allocation5], [#allocation6]
    $region13: #{net_forward.1} parent=1 // pred_fallthru
      _
    // Predicated region
    $region14: #{net_forward.1} parent=1 // pred_check
      _
    $region15: #{net_forward.1} parent=1 // pred_check_branch
      %36 = sbr.rel (0) target = $region17
    $region16: #{net_forward.1} parent=1 // pred_region
      %s38 = ssub.s32 16, 16
      %39 = vsyncadd [#allocation6], %s38
      %s41 = sshll.u32 %s3, 4
      %s42 = int_to_ptr.vmem [resolvable:$true] %s41
      %44 = dma.vmem_to_smem %s42, 16, [#allocation7], [#allocation6]
    $region17: #{net_forward.1} parent=1 // pred_fallthru
      _
    // Predicated region
    $region18: #{net_forward.1} parent=1 // pred_check
      _
    $region19: #{net_forward.1} parent=1 // pred_check_branch
      %46 = sbr.rel (0) target = $region21
    $region20: #{net_forward.1} parent=1 // pred_region
      _
    $region21: #{net_forward.1} parent=1 // pred_fallthru
      _
    // Predicated region
    $region22: #{net_forward.1} parent=1 // pred_check
      _
    $region23: #{net_forward.1} parent=1 // pred_check_branch
      %48 = sbr.rel (0) target = $region25
    $region24: #{net_forward.1} parent=1 // pred_region
      %49 = dma.done [#allocation4], 16
    $region25: #{net_forward.1} parent=1 // pred_fallthru
      _
    // Predicated region
    $region26: #{net_forward.1} parent=1 // pred_check
      _
    $region27: #{net_forward.1} parent=1 // pred_check_branch
      %51 = sbr.rel (0) target = $region29
    $region28: #{net_forward.1} parent=1 // pred_region
      %52 = dma.done [#allocation6], 16
    $region29: #{net_forward.1} parent=1 // pred_fallthru
      _
    // Predicated region
    $region30: #{net_forward.1} parent=1 // pred_check
      _
    $region31: #{net_forward.1} parent=1 // pred_check_branch
      %54 = sbr.rel (0) target = $region33
    $region32: #{net_forward.1} parent=1 // pred_region
      %55 = dma.done [#allocation6], 16
    $region33: #{net_forward.1} parent=1 // pred_fallthru
      _
    %56 = sfence
    %v57 = vld [vmem:[%s0] sm:$0xff]
    %v58 = vld [vmem:[%s0 + $0x8] sm:$0xff]
    %s59 = sld [smem:[#allocation3]]
    %v60 = vstv %s59
    %v61 = vmul.f32 %v60, %v57
    %s62 = sld [smem:[#allocation3 + $0x1]]
    %v63 = vstv %s62
    %v64 = vmul.f32 %v63, %v58
    %v65 = vadd.f32 %v61, %v64
    %s66 = sld [smem:[#allocation5]]
    %v67 = vstv %s66
    %v68 = vadd.f32 %v65, %v67
    %s69 = sld [smem:[#allocation7]]
    %v70 = vtanh.pop %v68
    %v71 = vstv %s69
    %v72 = vmul.f32 %v71, %v70
    %v73 = vadd.f32 %v72, 0.0
    %s74 = sld [smem:[#allocation3 + $0x2]]
    %v75 = vstv %s74
    %v76 = vmul.f32 %v75, %v57
    %s77 = sld [smem:[#allocation3 + $0x3]]
    %v78 = vstv %s77
    %v79 = vmul.f32 %v78, %v58
    %v80 = vadd.f32 %v76, %v79
    %s81 = sld [smem:[#allocation5 + $0x1]]
    %v82 = vstv %s81
    %v83 = vadd.f32 %v80, %v82
    %s84 = sld [smem:[#allocation7 + $0x1]]
    %v85 = vtanh.pop %v83
    %v86 = vstv %s84
    %v87 = vmul.f32 %v86, %v85
    %v88 = vadd.f32 %v73, %v87
    %s89 = sld [smem:[#allocation3 + $0x4]]
    %v90 = vstv %s89
    %v91 = vmul.f32 %v90, %v57
    %s92 = sld [smem:[#allocation3 + $0x5]]
    %v93 = vstv %s92
    %v94 = vmul.f32 %v93, %v58
    %v95 = vadd.f32 %v91, %v94
    %s96 = sld [smem:[#allocation5 + $0x2]]
    %v97 = vstv %s96
    %v98 = vadd.f32 %v95, %v97
    %s99 = sld [smem:[#allocation7 + $0x2]]
    %v100 = vtanh.pop %v98
    %v101 = vstv %s99
    %v102 = vmul.f32 %v101, %v100
    %v103 = vadd.f32 %v88, %v102
    %s104 = sld [smem:[#allocation3 + $0x6]]
    %v105 = vstv %s104
    %v106 = vmul.f32 %v105, %v57
    %s107 = sld [smem:[#allocation3 + $0x7]]
    %v108 = vstv %s107
    %v109 = vmul.f32 %v108, %v58
    %v110 = vadd.f32 %v106, %v109
    %s111 = sld [smem:[#allocation5 + $0x3]]
    %v112 = vstv %s111
    %v113 = vadd.f32 %v110, %v112
    %s114 = sld [smem:[#allocation7 + $0x3]]
    %v115 = vtanh.pop %v113
    %v116 = vstv %s114
    %v117 = vmul.f32 %v116, %v115
    %v118 = vadd.f32 %v103, %v117
    %s119 = sld [smem:[#allocation3 + $0x8]]
    %v120 = vstv %s119
    %v121 = vmul.f32 %v120, %v57
    %s122 = sld [smem:[#allocation3 + $0x9]]
    %v123 = vstv %s122
    %v124 = vmul.f32 %v123, %v58
    %v125 = vadd.f32 %v121, %v124
    %s126 = sld [smem:[#allocation5 + $0x4]]
    %v127 = vstv %s126
    %v128 = vadd.f32 %v125, %v127
    %s129 = sld [smem:[#allocation7 + $0x4]]
    %v130 = vtanh.pop %v128
    %v131 = vstv %s129
    %v132 = vmul.f32 %v131, %v130
    %v133 = vadd.f32 %v118, %v132
    %s134 = sld [smem:[#allocation3 + $0xa]]
    %v135 = vstv %s134
    %v136 = vmul.f32 %v135, %v57
    %s137 = sld [smem:[#allocation3 + $0xb]]
    %v138 = vstv %s137
    %v139 = vmul.f32 %v138, %v58
    %v140 = vadd.f32 %v136, %v139
    %s141 = sld [smem:[#allocation5 + $0x5]]
    %v142 = vstv %s141
    %v143 = vadd.f32 %v140, %v142
    %s144 = sld [smem:[#allocation7 + $0x5]]
    %v145 = vtanh.pop %v143
    %v146 = vstv %s144
    %v147 = vmul.f32 %v146, %v145
    %v148 = vadd.f32 %v133, %v147
    %s149 = sld [smem:[#allocation3 + $0xc]]
    %v150 = vstv %s149
    %v151 = vmul.f32 %v150, %v57
    %s152 = sld [smem:[#allocation3 + $0xd]]
    %v153 = vstv %s152
    %v154 = vmul.f32 %v153, %v58
    %v155 = vadd.f32 %v151, %v154
    %s156 = sld [smem:[#allocation5 + $0x6]]
    %v157 = vstv %s156
    %v158 = vadd.f32 %v155, %v157
    %s159 = sld [smem:[#allocation7 + $0x6]]
    %v160 = vtanh.pop %v158
    %v161 = vstv %s159
    %v162 = vmul.f32 %v161, %v160
    %v163 = vadd.f32 %v148, %v162
    %s164 = sld [smem:[#allocation3 + $0xe]]
    %v165 = vstv %s164
    %v166 = vmul.f32 %v165, %v57
    %s167 = sld [smem:[#allocation3 + $0xf]]
    %v168 = vstv %s167
    %v169 = vmul.f32 %v168, %v58
    %v170 = vadd.f32 %v166, %v169
    %s171 = sld [smem:[#allocation5 + $0x7]]
    %v172 = vstv %s171
    %v173 = vadd.f32 %v170, %v172
    %s174 = sld [smem:[#allocation7 + $0x7]]
    %v175 = vtanh.pop %v173
    %v176 = vstv %s174
    %v177 = vmul.f32 %v176, %v175
    %v178 = vadd.f32 %v163, %v177
    %s179 = sld [smem:[#allocation3 + $0x10]]
    %v180 = vstv %s179
    %v181 = vmul.f32 %v180, %v57
    %s182 = sld [smem:[#allocation3 + $0x11]]
    %v183 = vstv %s182
    %v184 = vmul.f32 %v183, %v58
    %v185 = vadd.f32 %v181, %v184
    %s186 = sld [smem:[#allocation5 + $0x8]]
    %v187 = vstv %s186
    %v188 = vadd.f32 %v185, %v187
    %s189 = sld [smem:[#allocation7 + $0x8]]
    %v190 = vtanh.pop %v188
    %v191 = vstv %s189
    %v192 = vmul.f32 %v191, %v190
    %v193 = vadd.f32 %v178, %v192
    %s194 = sld [smem:[#allocation3 + $0x12]]
    %v195 = vstv %s194
    %v196 = vmul.f32 %v195, %v57
    %s197 = sld [smem:[#allocation3 + $0x13]]
    %v198 = vstv %s197
    %v199 = vmul.f32 %v198, %v58
    %v200 = vadd.f32 %v196, %v199
    %s201 = sld [smem:[#allocation5 + $0x9]]
    %v202 = vstv %s201
    %v203 = vadd.f32 %v200, %v202
    %s204 = sld [smem:[#allocation7 + $0x9]]
    %v205 = vtanh.pop %v203
    %v206 = vstv %s204
    %v207 = vmul.f32 %v206, %v205
    %v208 = vadd.f32 %v193, %v207
    %s209 = sld [smem:[#allocation2]]
    %v210 = vstv %s209
    %v211 = vadd.f32 %v208, %v210
    %v212 = vtanh.pop %v211
    %v213 = vmul.f32 %v212, 0.5
    %v214 = vadd.f32 %v213, 0.5
    %215 = vst [vmem:[%s5] sm:$0xff] %v214
    // Predicated region
    $region34: #{net_forward.1} parent=1 // pred_check
      _
    $region35: #{net_forward.1} parent=1 // pred_check_branch
      %217 = sbr.rel (0) target = $region37
    $region36: #{net_forward.1} parent=1 // pred_region
      _
    $region37: #{net_forward.1} parent=1 // pred_fallthru
      _
    // Predicated region
    $region38: #{net_forward.1} parent=1 // pred_check
      _
    $region39: #{net_forward.1} parent=1 // pred_check_branch
      %219 = sbr.rel (0) target = $region41
    $region40: #{net_forward.1} parent=1 // pred_region
      _
    $region41: #{net_forward.1} parent=1 // pred_fallthru
      _
    %220 = vsyncpa [#allocation4], 1
    %221 = vsyncpa [#allocation6], 1

</llo_original>
